<compile_context>
chip_gen: v7x
topology: tpu7x:2x2x1
jax: 0.10.0
libtpu: 0.0.40
codegen_flags: <defaults>
</compile_context>

<pallas_src>
import numpy as np

import jax
import jax.numpy as jnp
from jax.experimental import pallas as pl
from jax.experimental.pallas import tpu as pltpu


# ---------------------------------------------------------------------------
# Small helpers (all trace-time Python ints)
# ---------------------------------------------------------------------------

def _cdiv(a, b):
    return -(-a // b)


def _round_up(a, b):
    return _cdiv(a, b) * b


def _round_down(a, b):
    return (a // b) * b


# Generation-aware VMEM budget: stay comfortably inside the default scoped
# VMEM limit on every generation (16 MiB v5e, 32 MiB v6e/v7x) so no
# vmem_limit_bytes override is needed.
try:
    _VMEM_BYTES = int(pltpu.get_tpu_info().vmem_capacity_bytes)
except Exception:  # pragma: no cover - conservative fallback
    _VMEM_BYTES = 64 << 20
_VMEM_BUDGET = min(_VMEM_BYTES // 4, 12 << 20)


# ---------------------------------------------------------------------------
# Kernels
# ---------------------------------------------------------------------------

def _net_vec_kernel(xT_ref, w1c_ref, b1c_ref, w2r_ref, b2_ref, o_ref):
    """F==1 / O==1 path, batch on lanes.

    xT_ref : (1, TN)  input points (lane-dense)
    w1c_ref: (H, 1)   hidden-layer weight column
    b1c_ref: (H, 1)   hidden-layer bias column
    w2r_ref: (1, H)   output-layer weight row (fed to the MXU)
    b2_ref : (1, 1)   output bias scalar (SMEM)
    o_ref  : (1, TN)  output (lane-dense)
    """
    x_row = xT_ref[...]                                        # (1, TN)
    # Layer 1: K=1 contraction -> VPU broadcast multiply + add + ReLU.
    h = jnp.maximum(w1c_ref[...] * x_row + b1c_ref[...], 0.0)  # (H, TN)
    # Layer 2: offload to the otherwise-idle MXU: (1,H) x (H,TN) -> (1,TN).
    y = jnp.dot(w2r_ref[...], h, preferred_element_type=jnp.float32)
    o_ref[...] = (y + b2_ref[0, 0]).astype(o_ref.dtype)


def _net_mxu_kernel(x_ref, w1_ref, b1_ref, w2_ref, b2_ref, o_ref):
    """General path (F and O not degenerate): fused MXU matmuls."""
    x = x_ref[...]                                              # (TM, F)
    h = jnp.dot(x, w1_ref[...], preferred_element_type=jnp.float32)
    h = jnp.maximum(h + b1_ref[...], 0.0)                       # (TM, H)
    y = jnp.dot(h, w2_ref[...], preferred_element_type=jnp.float32)
    o_ref[...] = (y + b2_ref[...]).astype(o_ref.dtype)          # (TM, O)


# ---------------------------------------------------------------------------
# Wrappers
# ---------------------------------------------------------------------------

_VMEM = pltpu.MemorySpace.VMEM
_SMEM = pltpu.MemorySpace.SMEM


def _net_forward_f1o1(x, w1, b1, w2, b2):
    """F==1 / O==1 forward (the case in the original script)."""
    N = x.shape[0]
    H = w1.shape[1]

    xT = x.reshape(1, N)          # batch on lanes (lane-dense layout plumbing)
    w1c = w1.reshape(H, 1)
    b1c = b1.reshape(H, 1)
    w2r = w2.reshape(1, H)        # row layout -> direct (1,H)x(H,TN) MXU dot
    b2s = b2.reshape(1, 1)

    # Single-shot footprint ~ (H + 4) * N * 4 B (h intermediate dominates).
    single_shot_max_n = max(1024, min(65536, _VMEM_BUDGET // ((H + 4) * 4)))

    if N <= single_shot_max_n:
        # No grid, no pipeline: whole arrays resident in VMEM.
        yT = pl.pallas_call(
            _net_vec_kernel,
            out_shape=jax.ShapeDtypeStruct((1, N), jnp.float32),
            in_specs=[
                pl.BlockSpec(memory_space=_VMEM),   # xT
                pl.BlockSpec(memory_space=_VMEM),   # w1c
                pl.BlockSpec(memory_space=_VMEM),   # b1c
                pl.BlockSpec(memory_space=_VMEM),   # w2r
                pl.BlockSpec(memory_space=_SMEM),   # b2 scalar
            ],
            out_specs=pl.BlockSpec(memory_space=_VMEM),
        )(xT, w1c, b1c, w2r, b2s)
        return yT.reshape(N, 1)

    # Large batch: lane-tiled grid, unpadded input/output (Pallas masks the
    # partial last block), weights resident (constant index_map -> fetched
    # once), batch axis "parallel" so v7x's two TensorCores both work.
    tn = (_VMEM_BUDGET // 2) // ((H + 6) * 4)        # per-step h-tile budget
    tn = min(tn, 8192)                               # amortize ~0.35us/step
    tn = min(tn, _round_up(_cdiv(N, 2), 128))        # keep >=2 tiles for v7x
    tn = max(128, _round_down(tn, 128))
    n_tiles = _cdiv(N, tn)

    yT = pl.pallas_call(
        _net_vec_kernel,
        out_shape=jax.ShapeDtypeStruct((1, N), jnp.float32),
        grid=(n_tiles,),
        in_specs=[
            pl.BlockSpec((1, tn), lambda i: (0, i)),             # x tile
            pl.BlockSpec((H, 1), lambda i: (0, 0)),              # w1 (resident)
            pl.BlockSpec((H, 1), lambda i: (0, 0)),              # b1 (resident)
            pl.BlockSpec((1, H), lambda i: (0, 0)),              # w2 (resident)
            pl.BlockSpec(memory_space=_SMEM),                    # b2 scalar
        ],
        out_specs=pl.BlockSpec((1, tn), lambda i: (0, i)),
        compiler_params=pltpu.CompilerParams(
            dimension_semantics=("parallel",)),
    )(xT, w1c, b1c, w2r, b2s)
    return yT.reshape(N, 1)


def _net_forward_general(x, w1, b1, w2, b2):
    """General (F, O) forward: fused MXU kernel, row-tiled for large batches."""
    N, F = x.shape
    H = w1.shape[1]
    O = w2.shape[1]
    b1r = b1.reshape(1, H)
    b2r = b2.reshape(1, O)

    weight_bytes = 4 * (F * H + H + H * O + O)
    single_bytes = 4 * N * (F + H + O) + weight_bytes

    if single_bytes <= _VMEM_BUDGET:
        # Small problem: single shot, no grid.
        return pl.pallas_call(
            _net_mxu_kernel,
            out_shape=jax.ShapeDtypeStruct((N, O), jnp.float32),
            in_specs=[pl.BlockSpec(memory_space=_VMEM)] * 5,
            out_specs=pl.BlockSpec(memory_space=_VMEM),
        )(x, w1, b1r, w2, b2r)

    # Large batch: row-tiled grid, weights resident, batch axis "parallel".
    # NOTE: if O << 128 and N is huge, a transposed lane-dense (O, N) output
    # layout would avoid masked partial stores; not needed at this module's
    # shapes.
    tm = (_VMEM_BUDGET // 2 - weight_bytes) // (4 * (2 * F + H + 2 * O))
    tm = max(8, min(512, _round_down(tm, 8)))
    n_tiles = _cdiv(N, tm)

    return pl.pallas_call(
        _net_mxu_kernel,
        out_shape=jax.ShapeDtypeStruct((N, O), jnp.float32),
        grid=(n_tiles,),
        in_specs=[
            pl.BlockSpec((tm, F), lambda i: (i, 0)),             # x tile
            pl.BlockSpec((F, H), lambda i: (0, 0)),              # w1 (resident)
            pl.BlockSpec((1, H), lambda i: (0, 0)),              # b1 (resident)
            pl.BlockSpec((H, O), lambda i: (0, 0)),              # w2 (resident)
            pl.BlockSpec((1, O), lambda i: (0, 0)),              # b2 (resident)
        ],
        out_specs=pl.BlockSpec((tm, O), lambda i: (i, 0)),
        compiler_params=pltpu.CompilerParams(
            dimension_semantics=("parallel",)),
    )(x, w1, b1r, w2, b2r)


def net_forward(x, w1, b1, w2, b2):
    """x: (N, F); w1: (F, H); b1: (H,); w2: (H, O); b2: (O,)."""
    F = x.shape[1]
    O = w2.shape[1]
    if F == 1 and O == 1:
        return _net_forward_f1o1(x, w1, b1, w2, b2)
    return _net_forward_general(x, w1, b1, w2, b2)


def init_params(key, n_feature, n_hidden, n_output):
    """Deterministic init mimicking torch.nn.Linear default U(-1/sqrt(in), 1/sqrt(in))."""
    k1, k2, k3, k4 = jax.random.split(key, 4)
    bound1 = 1.0 / (n_feature ** 0.5)
    bound2 = 1.0 / (n_hidden ** 0.5)
    # Stored already transposed: (in, out)
    w1 = jax.random.uniform(k1, (n_feature, n_hidden), jnp.float32, -bound1, bound1)
    b1 = jax.random.uniform(k2, (n_hidden,), jnp.float32, -bound1, bound1)
    w2 = jax.random.uniform(k3, (n_hidden, n_output), jnp.float32, -bound2, bound2)
    b2 = jax.random.uniform(k4, (n_output,), jnp.float32, -bound2, bound2)
    return w1, b1, w2, b2


def _ref_forward(x, w1, b1, w2, b2):
    """float64 numpy reference (ground truth for the f32 kernels)."""
    x, w1, b1, w2, b2 = (np.asarray(a, np.float64) for a in (x, w1, b1, w2, b2))
    h = np.maximum(x @ w1 + b1, 0.0)
    return (h @ w2 + b2).astype(np.float32)


if __name__ == "__main__":
    # The original script feeds x = linspace(0.4, 1.8, len(L_list)) as an
    # (N, 1) float32 column vector; Net(n_feature=1, n_hidden=H, n_output=1).
    N_POINTS = 8
    N_FEATURE = 1
    N_HIDDEN = 32
    N_OUTPUT = 1

    key = jax.random.PRNGKey(0)
    w1, b1, w2, b2 = init_params(key, N_FEATURE, N_HIDDEN, N_OUTPUT)

    # 1) Script-faithful tiny case (single-shot VPU/MXU kernel, no grid).
    x = jnp.linspace(0.4, 1.8, N_POINTS, dtype=jnp.float32).reshape(N_POINTS, 1)
    out = jax.block_until_ready(net_forward(x, w1, b1, w2, b2))
    ref = _ref_forward(x, w1, b1, w2, b2)
    assert out.shape == (N_POINTS, N_OUTPUT)
    assert np.allclose(np.asarray(out), ref, atol=1e-4, rtol=1e-4)

    # 2) Moderate batch now takes the single-shot path too (raised threshold),
    #    with a non-128-multiple lane width.
    N_MED = 1000
    xm = jnp.linspace(0.4, 1.8, N_MED, dtype=jnp.float32).reshape(N_MED, 1)
    out_m = jax.block_until_ready(net_forward(xm, w1, b1, w2, b2))
    ref_m = _ref_forward(xm, w1, b1, w2, b2)
    assert out_m.shape == (N_MED, 1)
    assert np.allclose(np.asarray(out_m), ref_m, atol=1e-4, rtol=1e-4)

    # 3) Large batch exercises the lane-tiled "parallel" grid path with an
    #    unpadded partial last block (no wrapper pad/slice HBM passes).
    N_BIG = 100_000
    xb = jnp.linspace(0.4, 1.8, N_BIG, dtype=jnp.float32).reshape(N_BIG, 1)
    out_b = jax.block_until_ready(net_forward(xb, w1, b1, w2, b2))
    ref_b = _ref_forward(xb, w1, b1, w2, b2)
    assert out_b.shape == (N_BIG, 1)
    assert np.allclose(np.asarray(out_b), ref_b, atol=1e-4, rtol=1e-4)

    # 4) General (non-degenerate F/O) path: small single-shot MXU kernel.
    F2, H2, O2, N2 = 4, 32, 2, 16
    w1g, b1g, w2g, b2g = init_params(jax.random.PRNGKey(1), F2, H2, O2)
    xg = jax.random.normal(jax.random.PRNGKey(2), (N2, F2), jnp.float32)
    out_g = jax.block_until_ready(net_forward(xg, w1g, b1g, w2g, b2g))
    ref_g = _ref_forward(xg, w1g, b1g, w2g, b2g)
    assert out_g.shape == (N2, O2)
    assert np.allclose(np.asarray(out_g), ref_g, atol=1e-4, rtol=1e-4)

    # 5) General path, large batch: exercises the new row-tiled MXU grid
    #    (resident weights, "parallel" rows, partial last row-block).
    N3 = 90_000
    xg2 = jax.random.normal(jax.random.PRNGKey(3), (N3, F2), jnp.float32)
    out_g2 = jax.block_until_ready(net_forward(xg2, w1g, b1g, w2g, b2g))
    ref_g2 = _ref_forward(xg2, w1g, b1g, w2g, b2g)
    assert out_g2.shape == (N3, O2)
    assert np.allclose(np.asarray(out_g2), ref_g2, atol=1e-4, rtol=1e-4)

    print("KERNEL_OK")
</pallas_src>

<mosaic_0001>
module attributes {stable_mosaic.version = 11 : i64} {
  func.func @_net_vec_kernel(%arg0: memref<1x8xf32, #tpu.memory_space<vmem>>, %arg1: memref<32x1xf32, #tpu.memory_space<vmem>>, %arg2: memref<32x1xf32, #tpu.memory_space<vmem>>, %arg3: memref<1x32xf32, #tpu.memory_space<vmem>>, %arg4: memref<1x1xf32, #tpu.memory_space<smem>>, %arg5: memref<1x8xf32, #tpu.memory_space<vmem>>) attributes {dimension_semantics = [], scalar_prefetch = 0 : i64, scratch_operands = 0 : i64, tpu.core_type = #tpu.core_type<tc>} {
    %c0 = arith.constant 0 : index
    %c0_0 = arith.constant 0 : index
    %0 = vector.load %arg0[%c0, %c0_0] : memref<1x8xf32, #tpu.memory_space<vmem>>, vector<1x8xf32>
    %c0_1 = arith.constant 0 : index
    %c0_2 = arith.constant 0 : index
    %1 = vector.load %arg1[%c0_1, %c0_2] : memref<32x1xf32, #tpu.memory_space<vmem>>, vector<32x1xf32>
    %2 = vector.broadcast %1 : vector<32x1xf32> to vector<32x8xf32>
    %3 = vector.broadcast %0 : vector<1x8xf32> to vector<32x8xf32>
    %4 = arith.mulf %2, %3 : vector<32x8xf32>
    %c0_3 = arith.constant 0 : index
    %c0_4 = arith.constant 0 : index
    %5 = vector.load %arg2[%c0_3, %c0_4] : memref<32x1xf32, #tpu.memory_space<vmem>>, vector<32x1xf32>
    %6 = vector.broadcast %5 : vector<32x1xf32> to vector<32x8xf32>
    %7 = arith.addf %4, %6 : vector<32x8xf32>
    %cst = arith.constant 0.000000e+00 : f32
    %8 = vector.broadcast %cst : f32 to vector<32x8xf32>
    %9 = arith.maximumf %7, %8 : vector<32x8xf32>
    %c0_5 = arith.constant 0 : index
    %c0_6 = arith.constant 0 : index
    %10 = vector.load %arg3[%c0_5, %c0_6] : memref<1x32xf32, #tpu.memory_space<vmem>>, vector<1x32xf32>
    %cst_7 = arith.constant dense<0.000000e+00> : vector<1x8xf32>
    %11 = tpu.matmul %10, %9, %cst_7 {dimension_numbers = #tpu.dot_dimension_numbers<[1], [0], [0], [1], [0, 0, 1, 1], [], []>} : vector<1x32xf32>, vector<32x8xf32>, vector<1x8xf32> -> vector<1x8xf32>
    %c0_8 = arith.constant 0 : index
    %c0_9 = arith.constant 0 : index
    %12 = memref.load %arg4[%c0_8, %c0_9] : memref<1x1xf32, #tpu.memory_space<smem>>
    %13 = vector.broadcast %12 : f32 to vector<1x8xf32>
    %14 = arith.addf %11, %13 : vector<1x8xf32>
    %c0_10 = arith.constant 0 : index
    %c0_11 = arith.constant 0 : index
    %15 = vector.load %arg5[%c0_10, %c0_11] : memref<1x8xf32, #tpu.memory_space<vmem>>, vector<1x8xf32>
    tpu.vector_store %arg5[%c0_10, %c0_11], %14 {strides = array<i32>} : memref<1x8xf32, #tpu.memory_space<vmem>>, vector<1x8xf32>,
    return
  }
}

</mosaic_0001>

<llo_original>
// kernel: tpu_custom_call.1
$region0: #{tpu_custom_call.1}
  #allocation0 [shape = 'u32[]', space=smem, size = 0x4, offset = 0x4, fixed_abs, tag = 'smem constant byte address 0x4 - core index']
  #allocation1 [shape = 'u32[144,128]{1,0:T(1,128)}', space=vmem, size = 0x12000, scoped, tag = 'internal scratch']
  #allocation2 [shape = 'f32[1,1]{1,0:T(1,128)S(6)}', space=smem, size = 0x200, scoped, tag = 'scoped memory for tpu_custom_call.1']
  %s0 = inlined_call_operand.vmem [shape: f32[1,8], index: 0, kind: input, shape index: {}]
  %s1 = inlined_call_operand.vmem [shape: f32[32,1], index: 1, kind: input, shape index: {}]
  %s2 = inlined_call_operand.vmem [shape: f32[32,1], index: 2, kind: input, shape index: {}]
  %s3 = inlined_call_operand.vmem [shape: f32[1,32], index: 3, kind: input, shape index: {}]
  %s4 = inlined_call_operand.<no memory space> [shape: f32[1,1], index: 4, kind: input, shape index: {}]
  %s5 = inlined_call_operand.hbm [shape: f32[1,8], index: 5, kind: output, shape index: {}]
  %s6 = sld [smem:[#allocation0]]
  $region30: #{tpu_custom_call.1} parent=0
    _
  %s8 = ssub.s32 1, %s6
  %s9 = scalar_select 0, %s8, %s6
  %10 = sst [smem:[#allocation2]] %s4
  $region1: #{tpu_custom_call.1} parent=0
    #allocation3 [shape = 'u8[512]{0}', space=vmem, size = 0x400, scoped, tag = 'output window, operand 0, single buffered']
    #allocation4 [shape = 's32[1]{0}', space=sflag, size = 0x4, scoped, tag = 'scoped memory for tpu_custom_call.1']
    %11 = vsyncpa [#allocation4], 0
    // Predicated region
    $region2: #{tpu_custom_call.1} parent=1 // pred_check
      _
    $region3: #{tpu_custom_call.1} parent=1 // pred_check_branch
      %13 = sbr.rel (0) target = $region5
    $region4: #{tpu_custom_call.1} parent=1 // pred_region
      _
    $region5: #{tpu_custom_call.1} parent=1 // pred_fallthru
      _
    // Predicated region
    $region6: #{tpu_custom_call.1} parent=1 // pred_check
      _
    $region7: #{tpu_custom_call.1} parent=1 // pred_check_branch
      %15 = sbr.rel (0) target = $region9
    $region8: #{tpu_custom_call.1} parent=1 // pred_region
      _
    $region9: #{tpu_custom_call.1} parent=1 // pred_fallthru
      _
    // Predicated region
    $region10: #{tpu_custom_call.1} parent=1 // pred_check
      _
    $region11: #{tpu_custom_call.1} parent=1 // pred_check_branch
      %17 = sbr.rel (0) target = $region13
    $region12: #{tpu_custom_call.1} parent=1 // pred_region
      _
    $region13: #{tpu_custom_call.1} parent=1 // pred_fallthru
      _
    // Predicated region
    $region14: #{tpu_custom_call.1} parent=1 // pred_check
      _
    $region15: #{tpu_custom_call.1} parent=1 // pred_check_branch
      %19 = sbr.rel (0) target = $region17
    $region16: #{tpu_custom_call.1} parent=1 // pred_region
      _
    $region17: #{tpu_custom_call.1} parent=1 // pred_fallthru
      _
    // Predicated region
    $region18: #{tpu_custom_call.1} parent=1 // pred_check
      _
    $region19: #{tpu_custom_call.1} parent=1 // pred_check_branch
      %21 = sbr.rel (0) target = $region21
    $region20: #{tpu_custom_call.1} parent=1 // pred_region
      _
    $region21: #{tpu_custom_call.1} parent=1 // pred_fallthru
      _
    %v22 = vld [vmem:[%s0] sm:$0x1]
    %v23 = vld [vmem:[%s1] sm:$0xff]
    %v24 = vld [vmem:[%s1 + $0x8] sm:$0xff]
    %v25 = vld [vmem:[%s1 + $0x10] sm:$0xff]
    %v26 = vld [vmem:[%s1 + $0x18] sm:$0xff]
    %28 = vset.pattern.permute.xlu0 0
    %29 = vperm.xlu0 %28, %v23
    %v30 = vpop.permute.xlu0 %29
    %33 = vset.pattern.permute.xlu0 0
    %34 = vperm.xlu0 %33, %v24
    %v35 = vpop.permute.xlu0 %34
    %38 = vset.pattern.permute.xlu0 0
    %39 = vperm.xlu0 %38, %v25
    %v40 = vpop.permute.xlu0 %39
    %43 = vset.pattern.permute.xlu0 0
    %44 = vperm.xlu0 %43, %v26
    %v45 = vpop.permute.xlu0 %44
    %v48 = vlaneseq
    %v49 = vshrl.u32 %v48, 7
    %v50 = vsub.s32 0, %v49
    %v51 = vrot.slane %v22, %v50
    %v53 = vmul.f32 %v30, %v51
    %v54 = vmul.f32 %v35, %v51
    %v55 = vmul.f32 %v40, %v51
    %v56 = vmul.f32 %v45, %v51
    %v57 = vld [vmem:[%s2] sm:$0xff]
    %v58 = vld [vmem:[%s2 + $0x8] sm:$0xff]
    %v59 = vld [vmem:[%s2 + $0x10] sm:$0xff]
    %v60 = vld [vmem:[%s2 + $0x18] sm:$0xff]
    %62 = vset.pattern.permute.xlu0 0
    %63 = vperm.xlu0 %62, %v57
    %v64 = vpop.permute.xlu0 %63
    %67 = vset.pattern.permute.xlu0 0
    %68 = vperm.xlu0 %67, %v58
    %v69 = vpop.permute.xlu0 %68
    %72 = vset.pattern.permute.xlu0 0
    %73 = vperm.xlu0 %72, %v59
    %v74 = vpop.permute.xlu0 %73
    %77 = vset.pattern.permute.xlu0 0
    %78 = vperm.xlu0 %77, %v60
    %v79 = vpop.permute.xlu0 %78
    %v81 = vadd.f32 %v53, %v64
    %v82 = vadd.f32 %v54, %v69
    %v83 = vadd.f32 %v55, %v74
    %v84 = vadd.f32 %v56, %v79
    %v85 = vmax.f32 %v81, 0.0
    %v86 = vmax.f32 %v82, 0.0
    %v87 = vmax.f32 %v83, 0.0
    %v88 = vmax.f32 %v84, 0.0
    %v89 = vld [vmem:[%s3] sm:$0x1]
    %s90 = sld [smem:[#allocation2]]
    %v91 = vstv %s90
    %vm92 = vcmask 261120
    %v94 = vsel %vm92, %v89, 0
    %96 = vmatprep.subr.mxu0 0.0
    %97 = vmatpush1.msra.mxu0 %v85
    %98 = vmatprep.subr.mxu0 0.0
    %99 = vmatpush1.msra.mxu0 %v86
    %100 = vmatprep.subr.mxu0 0.0
    %101 = vmatpush1.msra.mxu0 %v87
    %102 = vmatprep.subr.mxu0 0.0
    %103 = vmatpush1.msra.mxu0 %v88
    %104 = vmatprep.subr.mxu0 0.0
    %105 = vmatpush1.msra.mxu0 0.0
    %106 = vmatprep.subr.mxu0 0.0
    %107 = vmatpush1.msra.mxu0 0.0
    %108 = vmatprep.subr.mxu0 0.0
    %109 = vmatpush1.msra.mxu0 0.0
    %110 = vmatprep.subr.mxu0 0.0
    %111 = vmatpush1.msra.mxu0 0.0
    %112 = vmatprep.subr.mxu0 0.0
    %113 = vmatpush1.msra.mxu0 0.0
    %114 = vmatprep.subr.mxu0 0.0
    %115 = vmatpush1.msra.mxu0 0.0
    %116 = vmatprep.subr.mxu0 0.0
    %117 = vmatpush1.msra.mxu0 0.0
    %118 = vmatprep.subr.mxu0 0.0
    %119 = vmatpush1.msra.mxu0 0.0
    %120 = vmatprep.subr.mxu0 0.0
    %121 = vmatpush1.msra.mxu0 0.0
    %122 = vmatprep.subr.mxu0 0.0
    %123 = vmatpush1.msra.mxu0 0.0
    %124 = vmatprep.subr.mxu0 0.0
    %125 = vmatpush1.msra.mxu0 0.0
    %126 = vmatprep.subr.mxu0 0.0
    %127 = vmatpush1.msra.mxu0 0.0
    %128 = vmatprep.subr.mxu0 0.0
    %129 = vmatpush1.msra.mxu0 0.0
    %130 = vmatprep.subr.mxu0 0.0
    %131 = vmatpush1.msra.mxu0 0.0
    %132 = vmatprep.subr.mxu0 0.0
    %133 = vmatpush1.msra.mxu0 0.0
    %134 = vmatprep.subr.mxu0 0.0
    %135 = vmatpush1.msra.mxu0 0.0
    %136 = vmatprep.subr.mxu0 0.0
    %137 = vmatpush1.msra.mxu0 0.0
    %138 = vmatprep.subr.mxu0 0.0
    %139 = vmatpush1.msra.mxu0 0.0
    %140 = vmatprep.subr.mxu0 0.0
    %141 = vmatpush1.msra.mxu0 0.0
    %142 = vmatprep.subr.mxu0 0.0
    %143 = vmatpush1.msra.mxu0 0.0
    %144 = vmatprep.subr.mxu0 0.0
    %145 = vmatpush1.msra.mxu0 0.0
    %146 = vmatprep.subr.mxu0 0.0
    %147 = vmatpush1.msra.mxu0 0.0
    %148 = vmatprep.subr.mxu0 0.0
    %149 = vmatpush1.msra.mxu0 0.0
    %150 = vmatprep.subr.mxu0 0.0
    %151 = vmatpush1.msra.mxu0 0.0
    %152 = vmatprep.subr.mxu0 0.0
    %153 = vmatpush1.msra.mxu0 0.0
    %154 = vmatprep.subr.mxu0 0.0
    %155 = vmatpush1.msra.mxu0 0.0
    %156 = vmatprep.subr.mxu0 0.0
    %157 = vmatpush1.msra.mxu0 0.0
    %158 = vmatprep.subr.mxu0 0.0
    %159 = vmatpush1.msra.mxu0 0.0
    %160 = vmatprep.mubr.f32.mxu0 0.0
    %161 = vmatmul.mubr.f32.gmra.mrb[0].mxu0 %v94
    %v162 = vpop.f32.mrb[0].mxu0
    %v163 = vadd.f32 %v91, %v162
    %v164 = vpop.f32.mrb[0].mxu0
    %165 = vdwg.mxu0
    %vm166 = vcmask 57344
    %167 = vst.msk [vmem:[#allocation3] sm:$0x1] %vm166, %v163
    // Predicated region
    $region22: #{tpu_custom_call.1} parent=1 // pred_check
      _
    $region23: #{tpu_custom_call.1} parent=1 // pred_check_branch
      %169 = sbr.rel (0) target = $region25
    $region24: #{tpu_custom_call.1} parent=1 // pred_region
      %s171 = ssub.s32 16, 16
      %172 = vsyncadd [#allocation4], %s171
      %s174 = sshll.u32 [#allocation3], 4
      %s175 = int_to_ptr.vmem [resolvable:$true] %s174
      %177 = dma.vmem_to_hbm [thread:$0]  %s175, 16, %s5, [#allocation4]
    $region25: #{tpu_custom_call.1} parent=1 // pred_fallthru
      _
    // Predicated region
    $region26: #{tpu_custom_call.1} parent=1 // pred_check
      _
    $region27: #{tpu_custom_call.1} parent=1 // pred_check_branch
      %179 = sbr.rel (0) target = $region29
    $region28: #{tpu_custom_call.1} parent=1 // pred_region
      %180 = dma.done [#allocation4], 16
    $region29: #{tpu_custom_call.1} parent=1 // pred_fallthru
      _
    %181 = vsyncpa [#allocation4], 1

</llo_original>
